<compile_context>
chip_gen: v5e
topology: v5e:2x2
jax: 0.10.0
libtpu: 0.0.40
codegen_flags: <defaults>
</compile_context>

<pallas_src>
import functools

import numpy as np
import jax
import jax.numpy as jnp
from jax import lax
from jax.experimental import pallas as pl
from jax.experimental.pallas import tpu as pltpu

C_LIGHT = 299792458.0
PI = float(np.pi)
TWO_PI = float(2.0 * np.pi)


def _round_up(x, m):
    return ((x + m - 1) // m) * m


def _atan_poly(t):
    """atan(t) for t in [0, 1], Abramowitz & Stegun 4.4.49 (|err| <= 2e-8).

    Estrin evaluation: ~4 dependent steps instead of an 8-deep Horner chain.
    """
    x = t * t
    x2 = x * x
    x4 = x2 * x2
    b0 = jnp.float32(-0.3333314528) + jnp.float32(0.1999355085) * x
    b1 = jnp.float32(-0.1420889944) + jnp.float32(0.1065626393) * x
    b2 = jnp.float32(-0.0752896400) + jnp.float32(0.0429096138) * x
    b3 = jnp.float32(-0.0161657367) + jnp.float32(0.0028662257) * x
    c0 = b0 + b1 * x2
    c1 = b2 + b3 * x2
    p = c0 + c1 * x4
    return t + t * (x * p)


def _atan2(y, x):
    """Elementwise atan2 from plain VPU ops + one EUP approx reciprocal."""
    ax = jnp.abs(x)
    ay = jnp.abs(y)
    mx = jnp.maximum(ax, ay)
    mn = jnp.minimum(ax, ay)
    safe = jnp.where(mx > 0.0, mx, 1.0)
    t = mn * pl.reciprocal(safe, approx=True)   # EUP slot; ~2^-12 rel err, well
    a = _atan_poly(t)                            # inside the 2e-3 tolerance
    a = jnp.where(ay > ax, PI / 2.0 - a, a)
    a = jnp.where(x < 0.0, PI - a, a)
    return jnp.where(y < 0.0, -a, a)


def transfer_fn_kernel(params_ref, abs_ref, phase_ref, *, dw):
    # params_ref: VMEM f32[bb, 3]   columns = (n, k, d), one parameter set/row
    # abs_ref/phase_ref: VMEM f32[bb, nf]  (padded extended grid along lanes)
    bb, nf = abs_ref.shape
    params = params_ref[...]
    n = params[:, 0:1]          # (bb, 1)
    k = params[:, 1:2]          # (bb, 1)
    d = params[:, 2:3]          # (bb, 1)

    lane = lax.broadcasted_iota(jnp.int32, (bb, nf), 1)
    lane_f = lane.astype(jnp.float32)

    # ---- complex prefactor A = 4*nc / (nc + 1)^2, nc = n + i*k (per row) ----
    num_re = 4.0 * n
    num_im = 4.0 * k
    den_re = (n + 1.0) * (n + 1.0) - k * k
    den_im = 2.0 * (n + 1.0) * k
    den_sq = den_re * den_re + den_im * den_im
    inv_den = pl.reciprocal(den_sq, approx=True)
    inv_den = inv_den * (2.0 - den_sq * inv_den)     # one Newton step, (bb,1)
    a_re = (num_re * den_re + num_im * den_im) * inv_den
    a_im = (num_im * den_re - num_re * den_im) * inv_den

    # ---- exp(-i*(nc-1)*w*d/c), w = lane*dw generated in-kernel ----
    theta = lane_f * (d * jnp.float32(dw / C_LIGHT))        # (bb, nf)
    mag = jnp.exp(k * theta)
    ph = (n - 1.0) * theta
    # shared range reduction for the cos/sin pair (v5e VALU relief)
    ph_red = ph - jnp.float32(TWO_PI) * jnp.round(ph * jnp.float32(1.0 / TWO_PI))
    e_re = mag * jnp.cos(ph_red)
    e_im = -mag * jnp.sin(ph_red)

    # ---- H = A * E ----
    h_re = a_re * e_re - a_im * e_im
    h_im = a_re * e_im + a_im * e_re

    h_abs = jnp.sqrt(h_re * h_re + h_im * h_im)
    h_ph = _atan2(h_im, h_re)            # wrapped phase in (-pi, pi]

    # ---- np.unwrap (discont=pi, period=2pi), in-kernel, per row ----
    # previous element via an XLU lane roll (masked at lane 0); cumulative
    # 2*pi correction via a log-step (Hillis-Steele) roll/add prefix sum with
    # precomputed 0/1 lane masks so each scan step is one roll + mul + add.
    scan_masks = []
    step = 1
    while step < nf:
        scan_masks.append((lane >= step).astype(jnp.float32))
        step *= 2

    p_prev = pltpu.roll(h_ph, shift=1, axis=1)              # p_prev[i] = p[i-1]
    dd = scan_masks[0] * (h_ph - p_prev)                    # 0 at lane 0
    tmp = dd + PI
    ddmod = tmp - jnp.floor(tmp / TWO_PI) * TWO_PI - PI
    ddmod = jnp.where(jnp.logical_and(ddmod == -PI, dd > 0.0), PI, ddmod)
    corr = ddmod - dd
    corr = jnp.where(jnp.abs(dd) < PI, 0.0, corr)

    step = 1
    idx = 0
    while step < nf:                     # unrolled at trace time: log2(nf) steps
        corr = corr + scan_masks[idx] * pltpu.roll(corr, shift=step, axis=1)
        step *= 2
        idx += 1

    abs_ref[...] = h_abs
    phase_ref[...] = h_ph + corr


def _choose_block_b(b, block_b_max=32):
    """Pick the batch tile: >=2 grid steps when possible (dual-TC v7x), but
    capped at block_b_max to stay inside the 64-vreg file."""
    half = _round_up(max(1, -(-b // 2)), 8)
    return max(8, min(block_b_max, half))


def transfer_function_forward(w_np, d, n_param, k_param, *, block_b_max=32):
    """Mirrors TransferFunctionModel.forward().

    w_np:   1-D numpy array with the measured (uniform) angular-frequency grid.
    d, n_param, k_param: scalars or (B,)-shaped arrays (batched parameter sets).
    Returns (H_abs_truncated, H_phase_unwrapped_truncated); shape (nw,) for
    scalar parameters, (B, nw) for batched parameters.
    """
    w_np = np.asarray(w_np, dtype=np.float64)
    nw = int(w_np.shape[0])
    dw = float(w_np[1] - w_np[0])
    w_last = float(w_np[-1])
    # robust equivalent of torch.arange(0, w[-1] + dw, dw)
    n_full = int(round(w_last / dw)) + 1
    # round the in-kernel lane extent up to a full vreg width: unmasked vst
    # stores + aligned rolls; the extra tail lanes are sliced off below.
    nf_pad = _round_up(n_full, 128)

    scalar_in = (jnp.ndim(n_param) == 0 and jnp.ndim(k_param) == 0
                 and jnp.ndim(d) == 0)

    n_arr = jnp.atleast_1d(jnp.asarray(n_param, jnp.float32))
    k_arr = jnp.atleast_1d(jnp.asarray(k_param, jnp.float32))
    d_arr = jnp.atleast_1d(jnp.asarray(d, jnp.float32))
    b = max(n_arr.shape[0], k_arr.shape[0], d_arr.shape[0])
    n_arr = jnp.broadcast_to(n_arr, (b,))
    k_arr = jnp.broadcast_to(k_arr, (b,))
    d_arr = jnp.broadcast_to(d_arr, (b,))

    block_b = _choose_block_b(b, block_b_max)
    b_pad = _round_up(b, block_b)
    pad = b_pad - b
    if pad:
        n_arr = jnp.pad(n_arr, (0, pad), mode="edge")
        k_arr = jnp.pad(k_arr, (0, pad), mode="edge")
        d_arr = jnp.pad(d_arr, (0, pad), mode="edge")

    # pack (n, k, d) into one (b_pad, 3) input -> single per-step input DMA
    params = jnp.stack([n_arr, k_arr, d_arr], axis=1)

    kernel = functools.partial(transfer_fn_kernel, dw=dw)

    abs_full, phase_full = pl.pallas_call(
        kernel,
        out_shape=(jax.ShapeDtypeStruct((b_pad, nf_pad), jnp.float32),
                   jax.ShapeDtypeStruct((b_pad, nf_pad), jnp.float32)),
        grid=(b_pad // block_b,),
        in_specs=[pl.BlockSpec((block_b, 3), lambda i: (i, 0))],
        out_specs=(pl.BlockSpec((block_b, nf_pad), lambda i: (i, 0)),
                   pl.BlockSpec((block_b, nf_pad), lambda i: (i, 0))),
        compiler_params=pltpu.CompilerParams(
            dimension_semantics=("parallel",),
            vmem_limit_bytes=32 * 1024 * 1024),
    )(params)

    h_abs = abs_full[:b, n_full - nw:n_full]
    h_phase = phase_full[:b, n_full - nw:n_full]
    if scalar_in:
        return h_abs[0], h_phase[0]
    return h_abs, h_phase


def _numpy_reference(w_np, d_np, n_np, k_np):
    """complex128 + np.unwrap reference with the same H_th_function stand-in."""
    w_np = np.asarray(w_np, np.float64)
    nw = w_np.shape[0]
    dw_f = float(w_np[1] - w_np[0])
    n_full = int(round(float(w_np[-1]) / dw_f)) + 1
    full_w = np.arange(n_full, dtype=np.float64) * dw_f
    n_np = np.atleast_1d(np.asarray(n_np, np.float64))
    k_np = np.atleast_1d(np.asarray(k_np, np.float64))
    d_np = np.atleast_1d(np.asarray(d_np, np.float64))
    B = n_np.shape[0]
    ref_abs = np.zeros((B, nw))
    ref_phase = np.zeros((B, nw))
    for i in range(B):
        nc = n_np[i] + 1j * k_np[i]
        H = 4.0 * nc / (nc + 1.0) ** 2 * np.exp(
            -1j * (nc - 1.0) * full_w * d_np[i] / C_LIGHT)
        ref_abs[i] = np.abs(H)[n_full - nw:]
        ref_phase[i] = np.unwrap(np.angle(H))[n_full - nw:]
    return ref_abs, ref_phase


if __name__ == "__main__":
    # deterministic "initial conditions" (the module's learnable n, k) from
    # PRNGKey(0); batched over B candidate parameter sets (the main perf lever
    # for PINN training sweeps).
    key = jax.random.PRNGKey(0)
    kn, kk, kd = jax.random.split(key, 3)
    B = 10
    n_b = (1.5 + 1.0 * jax.random.uniform(kn, (B,))).astype(jnp.float32)    # refractive index
    k_b = (0.02 + 0.08 * jax.random.uniform(kk, (B,))).astype(jnp.float32)  # extinction coeff
    d_b = (80e-6 + 40e-6 * jax.random.uniform(kd, (B,))).astype(jnp.float32)  # thickness [m]

    # measured angular-frequency grid: 90 points, extended grid has 120 points
    # (NOT a multiple of 128 -> exercises the lane-padding path).
    dw = 2.0 * np.pi * 0.05e12
    w_np = dw * np.arange(30, 120, dtype=np.float64)

    h_abs, h_phase = transfer_function_forward(w_np, d_b, n_b, k_b)
    jax.block_until_ready((h_abs, h_phase))

    ref_abs, ref_phase = _numpy_reference(w_np, d_b, n_b, k_b)
    assert h_abs.shape == (B, w_np.shape[0]) and h_phase.shape == (B, w_np.shape[0])
    assert np.allclose(np.asarray(h_abs), ref_abs, rtol=2e-3, atol=2e-3), "abs mismatch"
    assert np.allclose(np.asarray(h_phase), ref_phase, rtol=2e-3, atol=2e-3), "phase mismatch"

    # single-parameter-set path (matches the original module's scalar forward),
    # on a 128-aligned extended grid.
    w2_np = dw * np.arange(32, 128, dtype=np.float64)
    ref2_abs, ref2_phase = _numpy_reference(
        w2_np, float(d_b[0]), float(n_b[0]), float(k_b[0]))
    h_abs_s, h_phase_s = transfer_function_forward(
        w2_np, float(d_b[0]), float(n_b[0]), float(k_b[0]))
    jax.block_until_ready((h_abs_s, h_phase_s))
    assert h_abs_s.shape == (w2_np.shape[0],) and h_phase_s.shape == (w2_np.shape[0],)
    assert np.allclose(np.asarray(h_abs_s), ref2_abs[0], rtol=2e-3, atol=2e-3), "scalar abs mismatch"
    assert np.allclose(np.asarray(h_phase_s), ref2_phase[0], rtol=2e-3, atol=2e-3), "scalar phase mismatch"

    print("KERNEL_OK")
</pallas_src>

<mosaic_0001>
module attributes {stable_mosaic.version = 11 : i64} {
  func.func @transfer_fn_kernel(%arg0: i32, %arg1: memref<8x3xf32, #tpu.memory_space<vmem>>, %arg2: memref<8x128xf32, #tpu.memory_space<vmem>>, %arg3: memref<8x128xf32, #tpu.memory_space<vmem>>) attributes {dimension_semantics = [#tpu.dimension_semantics<parallel>], iteration_bounds = array<i64: 2>, scalar_prefetch = 0 : i64, scratch_operands = 0 : i64, tpu.core_type = #tpu.core_type<tc>, window_params = [{transform_indices = @transform_0, window_bounds = array<i64: 8, 3>}, {transform_indices = @transform_1, window_bounds = array<i64: 8, 128>}, {transform_indices = @transform_2, window_bounds = array<i64: 8, 128>}]} {
    %c0 = arith.constant 0 : index
    %c0_0 = arith.constant 0 : index
    %0 = vector.load %arg1[%c0, %c0_0] : memref<8x3xf32, #tpu.memory_space<vmem>>, vector<8x3xf32>
    %1 = vector.extract_strided_slice %0 {offsets = [0, 0], sizes = [8, 1], strides = [1, 1]} : vector<8x3xf32> to vector<8x1xf32>
    %2 = vector.extract_strided_slice %0 {offsets = [0, 1], sizes = [8, 1], strides = [1, 1]} : vector<8x3xf32> to vector<8x1xf32>
    %3 = vector.extract_strided_slice %0 {offsets = [0, 2], sizes = [8, 1], strides = [1, 1]} : vector<8x3xf32> to vector<8x1xf32>
    %4 = tpu.iota {dimensions = array<i32: 1>} : vector<8x128xi32>
    %5 = arith.sitofp %4 : vector<8x128xi32> to vector<8x128xf32>
    %cst = arith.constant 4.000000e+00 : f32
    %6 = vector.broadcast %cst : f32 to vector<8x1xf32>
    %7 = arith.mulf %6, %1 : vector<8x1xf32>
    %cst_1 = arith.constant 4.000000e+00 : f32
    %8 = vector.broadcast %cst_1 : f32 to vector<8x1xf32>
    %9 = arith.mulf %8, %2 : vector<8x1xf32>
    %cst_2 = arith.constant 1.000000e+00 : f32
    %10 = vector.broadcast %cst_2 : f32 to vector<8x1xf32>
    %11 = arith.addf %1, %10 : vector<8x1xf32>
    %cst_3 = arith.constant 1.000000e+00 : f32
    %12 = vector.broadcast %cst_3 : f32 to vector<8x1xf32>
    %13 = arith.addf %1, %12 : vector<8x1xf32>
    %14 = arith.mulf %11, %13 : vector<8x1xf32>
    %15 = arith.mulf %2, %2 : vector<8x1xf32>
    %16 = arith.subf %14, %15 : vector<8x1xf32>
    %cst_4 = arith.constant 1.000000e+00 : f32
    %17 = vector.broadcast %cst_4 : f32 to vector<8x1xf32>
    %18 = arith.addf %1, %17 : vector<8x1xf32>
    %cst_5 = arith.constant 2.000000e+00 : f32
    %19 = vector.broadcast %cst_5 : f32 to vector<8x1xf32>
    %20 = arith.mulf %19, %18 : vector<8x1xf32>
    %21 = arith.mulf %20, %2 : vector<8x1xf32>
    %22 = arith.mulf %16, %16 : vector<8x1xf32>
    %23 = arith.mulf %21, %21 : vector<8x1xf32>
    %24 = arith.addf %22, %23 : vector<8x1xf32>
    %25 = tpu.reciprocal %24 {approx = true} : vector<8x1xf32> -> vector<8x1xf32>
    %26 = arith.mulf %24, %25 : vector<8x1xf32>
    %cst_6 = arith.constant 2.000000e+00 : f32
    %27 = vector.broadcast %cst_6 : f32 to vector<8x1xf32>
    %28 = arith.subf %27, %26 : vector<8x1xf32>
    %29 = arith.mulf %25, %28 : vector<8x1xf32>
    %30 = arith.mulf %7, %16 : vector<8x1xf32>
    %31 = arith.mulf %9, %21 : vector<8x1xf32>
    %32 = arith.addf %30, %31 : vector<8x1xf32>
    %33 = arith.mulf %32, %29 : vector<8x1xf32>
    %34 = arith.mulf %9, %16 : vector<8x1xf32>
    %35 = arith.mulf %7, %21 : vector<8x1xf32>
    %36 = arith.subf %34, %35 : vector<8x1xf32>
    %37 = arith.mulf %36, %29 : vector<8x1xf32>
    %cst_7 = arith.constant 1047.92249 : f32
    %38 = vector.broadcast %cst_7 : f32 to vector<8x1xf32>
    %39 = arith.mulf %3, %38 : vector<8x1xf32>
    %40 = vector.broadcast %39 : vector<8x1xf32> to vector<8x128xf32>
    %41 = arith.mulf %5, %40 : vector<8x128xf32>
    %42 = vector.broadcast %2 : vector<8x1xf32> to vector<8x128xf32>
    %43 = arith.mulf %42, %41 : vector<8x128xf32>
    %44 = math.exp %43 : vector<8x128xf32>
    %cst_8 = arith.constant 1.000000e+00 : f32
    %45 = vector.broadcast %cst_8 : f32 to vector<8x1xf32>
    %46 = arith.subf %1, %45 : vector<8x1xf32>
    %47 = vector.broadcast %46 : vector<8x1xf32> to vector<8x128xf32>
    %48 = arith.mulf %47, %41 : vector<8x128xf32>
    %cst_9 = arith.constant 0.159154937 : f32
    %49 = vector.broadcast %cst_9 : f32 to vector<8x128xf32>
    %50 = arith.mulf %48, %49 : vector<8x128xf32>
    %51 = math.roundeven %50 : vector<8x128xf32>
    %cst_10 = arith.constant 6.28318548 : f32
    %52 = vector.broadcast %cst_10 : f32 to vector<8x128xf32>
    %53 = arith.mulf %52, %51 : vector<8x128xf32>
    %54 = arith.subf %48, %53 : vector<8x128xf32>
    %55 = math.cos %54 : vector<8x128xf32>
    %56 = arith.mulf %44, %55 : vector<8x128xf32>
    %cst_11 = arith.constant 0.000000e+00 : f32
    %57 = vector.broadcast %cst_11 : f32 to vector<8x128xf32>
    %58 = arith.subf %57, %44 : vector<8x128xf32>
    %59 = math.sin %54 : vector<8x128xf32>
    %60 = arith.mulf %58, %59 : vector<8x128xf32>
    %61 = vector.broadcast %33 : vector<8x1xf32> to vector<8x128xf32>
    %62 = arith.mulf %61, %56 : vector<8x128xf32>
    %63 = vector.broadcast %37 : vector<8x1xf32> to vector<8x128xf32>
    %64 = arith.mulf %63, %60 : vector<8x128xf32>
    %65 = arith.subf %62, %64 : vector<8x128xf32>
    %66 = vector.broadcast %33 : vector<8x1xf32> to vector<8x128xf32>
    %67 = arith.mulf %66, %60 : vector<8x128xf32>
    %68 = vector.broadcast %37 : vector<8x1xf32> to vector<8x128xf32>
    %69 = arith.mulf %68, %56 : vector<8x128xf32>
    %70 = arith.addf %67, %69 : vector<8x128xf32>
    %71 = arith.mulf %65, %65 : vector<8x128xf32>
    %72 = arith.mulf %70, %70 : vector<8x128xf32>
    %73 = arith.addf %71, %72 : vector<8x128xf32>
    %74 = math.sqrt %73 : vector<8x128xf32>
    %75 = math.absf %65 : vector<8x128xf32>
    %76 = math.absf %70 : vector<8x128xf32>
    %77 = arith.maximumf %75, %76 : vector<8x128xf32>
    %78 = arith.minimumf %75, %76 : vector<8x128xf32>
    %cst_12 = arith.constant 0.000000e+00 : f32
    %79 = vector.broadcast %cst_12 : f32 to vector<8x128xf32>
    %80 = arith.cmpf ogt, %77, %79 : vector<8x128xf32>
    %cst_13 = arith.constant 1.000000e+00 : f32
    %81 = vector.broadcast %cst_13 : f32 to vector<8x128xf32>
    %82 = arith.select %80, %77, %81 : vector<8x128xi1>, vector<8x128xf32>
    %83 = tpu.reciprocal %82 {approx = true} : vector<8x128xf32> -> vector<8x128xf32>
    %84 = arith.mulf %78, %83 : vector<8x128xf32>
    %85 = arith.mulf %84, %84 : vector<8x128xf32>
    %86 = arith.mulf %85, %85 : vector<8x128xf32>
    %87 = arith.mulf %86, %86 : vector<8x128xf32>
    %cst_14 = arith.constant 0.199935511 : f32
    %88 = vector.broadcast %cst_14 : f32 to vector<8x128xf32>
    %89 = arith.mulf %88, %85 : vector<8x128xf32>
    %cst_15 = arith.constant -0.333331466 : f32
    %90 = vector.broadcast %cst_15 : f32 to vector<8x128xf32>
    %91 = arith.addf %90, %89 : vector<8x128xf32>
    %cst_16 = arith.constant 0.106562637 : f32
    %92 = vector.broadcast %cst_16 : f32 to vector<8x128xf32>
    %93 = arith.mulf %92, %85 : vector<8x128xf32>
    %cst_17 = arith.constant -1.420890e-01 : f32
    %94 = vector.broadcast %cst_17 : f32 to vector<8x128xf32>
    %95 = arith.addf %94, %93 : vector<8x128xf32>
    %cst_18 = arith.constant 0.0429096147 : f32
    %96 = vector.broadcast %cst_18 : f32 to vector<8x128xf32>
    %97 = arith.mulf %96, %85 : vector<8x128xf32>
    %cst_19 = arith.constant -0.0752896368 : f32
    %98 = vector.broadcast %cst_19 : f32 to vector<8x128xf32>
    %99 = arith.addf %98, %97 : vector<8x128xf32>
    %cst_20 = arith.constant 0.00286622578 : f32
    %100 = vector.broadcast %cst_20 : f32 to vector<8x128xf32>
    %101 = arith.mulf %100, %85 : vector<8x128xf32>
    %cst_21 = arith.constant -0.0161657371 : f32
    %102 = vector.broadcast %cst_21 : f32 to vector<8x128xf32>
    %103 = arith.addf %102, %101 : vector<8x128xf32>
    %104 = arith.mulf %95, %86 : vector<8x128xf32>
    %105 = arith.addf %91, %104 : vector<8x128xf32>
    %106 = arith.mulf %103, %86 : vector<8x128xf32>
    %107 = arith.addf %99, %106 : vector<8x128xf32>
    %108 = arith.mulf %107, %87 : vector<8x128xf32>
    %109 = arith.addf %105, %108 : vector<8x128xf32>
    %110 = arith.mulf %85, %109 : vector<8x128xf32>
    %111 = arith.mulf %84, %110 : vector<8x128xf32>
    %112 = arith.addf %84, %111 : vector<8x128xf32>
    %113 = arith.cmpf ogt, %76, %75 : vector<8x128xf32>
    %cst_22 = arith.constant 1.57079637 : f32
    %114 = vector.broadcast %cst_22 : f32 to vector<8x128xf32>
    %115 = arith.subf %114, %112 : vector<8x128xf32>
    %116 = arith.select %113, %115, %112 : vector<8x128xi1>, vector<8x128xf32>
    %cst_23 = arith.constant 0.000000e+00 : f32
    %117 = vector.broadcast %cst_23 : f32 to vector<8x128xf32>
    %118 = arith.cmpf olt, %65, %117 : vector<8x128xf32>
    %cst_24 = arith.constant 3.14159274 : f32
    %119 = vector.broadcast %cst_24 : f32 to vector<8x128xf32>
    %120 = arith.subf %119, %116 : vector<8x128xf32>
    %121 = arith.select %118, %120, %116 : vector<8x128xi1>, vector<8x128xf32>
    %cst_25 = arith.constant 0.000000e+00 : f32
    %122 = vector.broadcast %cst_25 : f32 to vector<8x128xf32>
    %123 = arith.cmpf olt, %70, %122 : vector<8x128xf32>
    %cst_26 = arith.constant 0.000000e+00 : f32
    %124 = vector.broadcast %cst_26 : f32 to vector<8x128xf32>
    %125 = arith.subf %124, %121 : vector<8x128xf32>
    %126 = arith.select %123, %125, %121 : vector<8x128xi1>, vector<8x128xf32>
    %c1_i32 = arith.constant 1 : i32
    %127 = vector.broadcast %c1_i32 : i32 to vector<8x128xi32>
    %128 = arith.cmpi sge, %4, %127 : vector<8x128xi32>
    %129 = arith.extui %128 : vector<8x128xi1> to vector<8x128xi32>
    %130 = arith.sitofp %129 : vector<8x128xi32> to vector<8x128xf32>
    %c2_i32 = arith.constant 2 : i32
    %131 = vector.broadcast %c2_i32 : i32 to vector<8x128xi32>
    %132 = arith.cmpi sge, %4, %131 : vector<8x128xi32>
    %133 = arith.extui %132 : vector<8x128xi1> to vector<8x128xi32>
    %134 = arith.sitofp %133 : vector<8x128xi32> to vector<8x128xf32>
    %c4_i32 = arith.constant 4 : i32
    %135 = vector.broadcast %c4_i32 : i32 to vector<8x128xi32>
    %136 = arith.cmpi sge, %4, %135 : vector<8x128xi32>
    %137 = arith.extui %136 : vector<8x128xi1> to vector<8x128xi32>
    %138 = arith.sitofp %137 : vector<8x128xi32> to vector<8x128xf32>
    %c8_i32 = arith.constant 8 : i32
    %139 = vector.broadcast %c8_i32 : i32 to vector<8x128xi32>
    %140 = arith.cmpi sge, %4, %139 : vector<8x128xi32>
    %141 = arith.extui %140 : vector<8x128xi1> to vector<8x128xi32>
    %142 = arith.sitofp %141 : vector<8x128xi32> to vector<8x128xf32>
    %c16_i32 = arith.constant 16 : i32
    %143 = vector.broadcast %c16_i32 : i32 to vector<8x128xi32>
    %144 = arith.cmpi sge, %4, %143 : vector<8x128xi32>
    %145 = arith.extui %144 : vector<8x128xi1> to vector<8x128xi32>
    %146 = arith.sitofp %145 : vector<8x128xi32> to vector<8x128xf32>
    %c32_i32 = arith.constant 32 : i32
    %147 = vector.broadcast %c32_i32 : i32 to vector<8x128xi32>
    %148 = arith.cmpi sge, %4, %147 : vector<8x128xi32>
    %149 = arith.extui %148 : vector<8x128xi1> to vector<8x128xi32>
    %150 = arith.sitofp %149 : vector<8x128xi32> to vector<8x128xf32>
    %c64_i32 = arith.constant 64 : i32
    %151 = vector.broadcast %c64_i32 : i32 to vector<8x128xi32>
    %152 = arith.cmpi sge, %4, %151 : vector<8x128xi32>
    %153 = arith.extui %152 : vector<8x128xi1> to vector<8x128xi32>
    %154 = arith.sitofp %153 : vector<8x128xi32> to vector<8x128xf32>
    %c1_i32_27 = arith.constant 1 : i32
    %155 = tpu.dynamic_rotate %126 by %c1_i32_27 dim 1 : vector<8x128xf32>, i32 -> vector<8x128xf32>
    %156 = arith.subf %126, %155 : vector<8x128xf32>
    %157 = arith.mulf %130, %156 : vector<8x128xf32>
    %cst_28 = arith.constant 3.14159274 : f32
    %158 = vector.broadcast %cst_28 : f32 to vector<8x128xf32>
    %159 = arith.addf %157, %158 : vector<8x128xf32>
    %cst_29 = arith.constant 6.28318548 : f32
    %160 = vector.broadcast %cst_29 : f32 to vector<8x128xf32>
    %161 = arith.divf %159, %160 : vector<8x128xf32>
    %162 = math.floor %161 : vector<8x128xf32>
    %cst_30 = arith.constant 6.28318548 : f32
    %163 = vector.broadcast %cst_30 : f32 to vector<8x128xf32>
    %164 = arith.mulf %162, %163 : vector<8x128xf32>
    %165 = arith.subf %159, %164 : vector<8x128xf32>
    %cst_31 = arith.constant 3.14159274 : f32
    %166 = vector.broadcast %cst_31 : f32 to vector<8x128xf32>
    %167 = arith.subf %165, %166 : vector<8x128xf32>
    %cst_32 = arith.constant -3.14159274 : f32
    %168 = vector.broadcast %cst_32 : f32 to vector<8x128xf32>
    %169 = arith.cmpf oeq, %167, %168 : vector<8x128xf32>
    %cst_33 = arith.constant 0.000000e+00 : f32
    %170 = vector.broadcast %cst_33 : f32 to vector<8x128xf32>
    %171 = arith.cmpf ogt, %157, %170 : vector<8x128xf32>
    %172 = arith.andi %169, %171 : vector<8x128xi1>
    %cst_34 = arith.constant 3.14159274 : f32
    %173 = vector.broadcast %cst_34 : f32 to vector<8x128xf32>
    %174 = arith.select %172, %173, %167 : vector<8x128xi1>, vector<8x128xf32>
    %175 = arith.subf %174, %157 : vector<8x128xf32>
    %176 = math.absf %157 : vector<8x128xf32>
    %cst_35 = arith.constant 3.14159274 : f32
    %177 = vector.broadcast %cst_35 : f32 to vector<8x128xf32>
    %178 = arith.cmpf olt, %176, %177 : vector<8x128xf32>
    %cst_36 = arith.constant 0.000000e+00 : f32
    %179 = vector.broadcast %cst_36 : f32 to vector<8x128xf32>
    %180 = arith.select %178, %179, %175 : vector<8x128xi1>, vector<8x128xf32>
    %c1_i32_37 = arith.constant 1 : i32
    %181 = tpu.dynamic_rotate %180 by %c1_i32_37 dim 1 : vector<8x128xf32>, i32 -> vector<8x128xf32>
    %182 = arith.mulf %130, %181 : vector<8x128xf32>
    %183 = arith.addf %180, %182 : vector<8x128xf32>
    %c2_i32_38 = arith.constant 2 : i32
    %184 = tpu.dynamic_rotate %183 by %c2_i32_38 dim 1 : vector<8x128xf32>, i32 -> vector<8x128xf32>
    %185 = arith.mulf %134, %184 : vector<8x128xf32>
    %186 = arith.addf %183, %185 : vector<8x128xf32>
    %c4_i32_39 = arith.constant 4 : i32
    %187 = tpu.dynamic_rotate %186 by %c4_i32_39 dim 1 : vector<8x128xf32>, i32 -> vector<8x128xf32>
    %188 = arith.mulf %138, %187 : vector<8x128xf32>
    %189 = arith.addf %186, %188 : vector<8x128xf32>
    %c8_i32_40 = arith.constant 8 : i32
    %190 = tpu.dynamic_rotate %189 by %c8_i32_40 dim 1 : vector<8x128xf32>, i32 -> vector<8x128xf32>
    %191 = arith.mulf %142, %190 : vector<8x128xf32>
    %192 = arith.addf %189, %191 : vector<8x128xf32>
    %c16_i32_41 = arith.constant 16 : i32
    %193 = tpu.dynamic_rotate %192 by %c16_i32_41 dim 1 : vector<8x128xf32>, i32 -> vector<8x128xf32>
    %194 = arith.mulf %146, %193 : vector<8x128xf32>
    %195 = arith.addf %192, %194 : vector<8x128xf32>
    %c32_i32_42 = arith.constant 32 : i32
    %196 = tpu.dynamic_rotate %195 by %c32_i32_42 dim 1 : vector<8x128xf32>, i32 -> vector<8x128xf32>
    %197 = arith.mulf %150, %196 : vector<8x128xf32>
    %198 = arith.addf %195, %197 : vector<8x128xf32>
    %c64_i32_43 = arith.constant 64 : i32
    %199 = tpu.dynamic_rotate %198 by %c64_i32_43 dim 1 : vector<8x128xf32>, i32 -> vector<8x128xf32>
    %200 = arith.mulf %154, %199 : vector<8x128xf32>
    %201 = arith.addf %198, %200 : vector<8x128xf32>
    %c0_44 = arith.constant 0 : index
    %c0_45 = arith.constant 0 : index
    %202 = vector.load %arg2[%c0_44, %c0_45] : memref<8x128xf32, #tpu.memory_space<vmem>>, vector<8x128xf32>
    tpu.vector_store %arg2[%c0_44, %c0_45], %74 {strides = array<i32>} : memref<8x128xf32, #tpu.memory_space<vmem>>, vector<8x128xf32>,
    %203 = arith.addf %126, %201 : vector<8x128xf32>
    %c0_46 = arith.constant 0 : index
    %c0_47 = arith.constant 0 : index
    %204 = vector.load %arg3[%c0_46, %c0_47] : memref<8x128xf32, #tpu.memory_space<vmem>>, vector<8x128xf32>
    tpu.vector_store %arg3[%c0_46, %c0_47], %203 {strides = array<i32>} : memref<8x128xf32, #tpu.memory_space<vmem>>, vector<8x128xf32>,
    return
  }
  func.func @transform_0(%arg0: i32) -> (i32, i32) {
    %c0_i32 = arith.constant 0 : i32
    %c0_i32_0 = arith.constant 0 : i32
    return %arg0, %c0_i32 : i32, i32
  }
  func.func @transform_1(%arg0: i32) -> (i32, i32) {
    %c0_i32 = arith.constant 0 : i32
    %c0_i32_0 = arith.constant 0 : i32
    return %arg0, %c0_i32 : i32, i32
  }
  func.func @transform_2(%arg0: i32) -> (i32, i32) {
    %c0_i32 = arith.constant 0 : i32
    %c0_i32_0 = arith.constant 0 : i32
    return %arg0, %c0_i32 : i32, i32
  }
}

</mosaic_0001>

<llo_original>
// kernel: tpu_custom_call.1
$region0: #{tpu_custom_call.1}
  #allocation0 [shape = 'u32[]', space=smem, size = 0x4, offset = 0x4, fixed_abs, tag = 'smem constant byte address 0x4 - core index']
  #allocation1 [shape = 'u32[72,128]{1,0:T(1,128)}', space=vmem, size = 0x9000, scoped, tag = 'internal scratch']
  %s0 = inlined_call_operand.vmem [shape: f32[16,3], index: 0, kind: input, shape index: {}]
  %s1 = inlined_call_operand.hbm [shape: f32[16,128], index: 1, kind: output, shape index: {0}]
  %s2 = inlined_call_operand.hbm [shape: f32[16,128], index: 2, kind: output, shape index: {1}]
  %3 = xla_tuple %s1, %s2
  %s4 = sld [smem:[#allocation0]]
  $region45: #{tpu_custom_call.1} parent=0
    _
  %s6 = ssub.s32 1, %s4
  %s7 = scalar_select 0, %s6, %s4
  $region1: #{tpu_custom_call.1} parent=0
    #allocation2 [shape = 'u8[8192]{0}', space=vmem, size = 0x2000, scoped, tag = 'output window, operand 0']
    #allocation3 [shape = 's32[2]{0}', space=sflag, size = 0x8, scoped, tag = 'scoped memory for tpu_custom_call.1']
    #allocation4 [shape = 'u8[8192]{0}', space=vmem, size = 0x2000, scoped, tag = 'output window, operand 1']
    #allocation5 [shape = 's32[2]{0}', space=sflag, size = 0x8, scoped, tag = 'scoped memory for tpu_custom_call.1']
    %8 = vsyncpa [#allocation3], 0
    %s9 = scalar_lea.sflag [#allocation3], 1
    %10 = vsyncpa %s9, 0
    %11 = vsyncpa [#allocation5], 0
    %s12 = scalar_lea.sflag [#allocation5], 1
    %13 = vsyncpa %s12, 0
    loop: start=0, step=1, limit=4
    $region2: #{tpu_custom_call.1} parent=1 // loop_pre_header
      _
    $region3: #{tpu_custom_call.1} parent=1 // loop_header
      %s15 = sphi 0, %s19
      %p16 = scmp.ge.s32.totalorder %s15, 4
      %s25 = sphi 0, %s27
      %s28 = sphi 0, %s25
      %s29 = sphi 0, %s28
      %s45 = sphi 0, %s29
      %s51 = sphi 0, %s53
      %s54 = sphi 0, %s51
      %s55 = sphi 0, %s54
      %s71 = sphi 0, %s55
      %s77 = sphi 0, %s79
      %s80 = sphi 0, %s77
      %s81 = sphi 0, %s80
      %s97 = sphi 0, %s81
    $region4: #{tpu_custom_call.1} parent=1 // loop_header_branch
      %18 = sbr.rel (%p16) target = $region8
    $region5: #{tpu_custom_call.1} parent=1 // loop_body
      %s20 = ssub.s32 %s15, 1
      %s21 = ssub.s32 %s15, 2
      %s22 = sadd.s32 %s15, 1
      %s23 = ssub.s32 %s15, %s22
      %p24 = scmp.eq.s32.totalorder %s23, 0
      %s26 = sadd.s32 %s25, 1
      %s27 = scalar_select %p24, %s25, %s26
      %p30 = pneg %p24
      %p31 = scmp.eq.s32.totalorder %s15, 1
      %p32 = por %p30, %p31
      %p33 = scmp.ne.s32.totalorder %s25, %s28
      %p34 = scmp.eq.s32.totalorder %s15, 0
      %p35 = por %p33, %p34
      %p36 = scmp.ne.s32.totalorder %s25, %s28
      %p37 = scmp.eq.s32.totalorder %s20, 1
      %p38 = por %p36, %p37
      %p39 = scmp.ne.s32.totalorder %s28, %s29
      %p40 = scmp.eq.s32.totalorder %s20, 0
      %p41 = por %p39, %p40
      %p42 = scmp.ne.s32.totalorder %s28, %s29
      %p43 = scmp.eq.s32.totalorder %s21, 1
      %p44 = por %p42, %p43
      %p46 = scmp.ne.s32.totalorder %s29, %s45
      %p47 = scmp.eq.s32.totalorder %s21, 0
      %p48 = por %p46, %p47
      %s49 = ssub.s32 %s15, %s22
      %p50 = scmp.eq.s32.totalorder %s49, 0
      %s52 = sadd.s32 %s51, 1
      %s53 = scalar_select %p50, %s51, %s52
      %p56 = pneg %p50
      %p57 = scmp.eq.s32.totalorder %s15, 1
      %p58 = por %p56, %p57
      %p59 = scmp.ne.s32.totalorder %s51, %s54
      %p60 = scmp.eq.s32.totalorder %s15, 0
      %p61 = por %p59, %p60
      %p62 = scmp.ne.s32.totalorder %s51, %s54
      %p63 = scmp.eq.s32.totalorder %s20, 1
      %p64 = por %p62, %p63
      %p65 = scmp.ne.s32.totalorder %s54, %s55
      %p66 = scmp.eq.s32.totalorder %s20, 0
      %p67 = por %p65, %p66
      %p68 = scmp.ne.s32.totalorder %s54, %s55
      %p69 = scmp.eq.s32.totalorder %s21, 1
      %p70 = por %p68, %p69
      %p72 = scmp.ne.s32.totalorder %s55, %s71
      %p73 = scmp.eq.s32.totalorder %s21, 0
      %p74 = por %p72, %p73
      %s75 = ssub.s32 %s15, %s22
      %p76 = scmp.eq.s32.totalorder %s75, 0
      %s78 = sadd.s32 %s77, 1
      %s79 = scalar_select %p76, %s77, %s78
      %p82 = pneg %p76
      %p83 = scmp.eq.s32.totalorder %s15, 1
      %p84 = por %p82, %p83
      %p85 = scmp.ne.s32.totalorder %s77, %s80
      %p86 = scmp.eq.s32.totalorder %s15, 0
      %p87 = por %p85, %p86
      %p88 = scmp.ne.s32.totalorder %s77, %s80
      %p89 = scmp.eq.s32.totalorder %s20, 1
      %p90 = por %p88, %p89
      %p91 = scmp.ne.s32.totalorder %s80, %s81
      %p92 = scmp.eq.s32.totalorder %s20, 0
      %p93 = por %p91, %p92
      %p94 = scmp.ne.s32.totalorder %s80, %s81
      %p95 = scmp.eq.s32.totalorder %s21, 1
      %p96 = por %p94, %p95
      %p98 = scmp.ne.s32.totalorder %s81, %s97
      %p99 = scmp.eq.s32.totalorder %s21, 0
      %p100 = por %p98, %p99
      %p101 = scmp.le.s32.totalorder 1, %s15
      %p102 = scmp.lt.s32.totalorder %s15, 3
      %p103 = pnand %p101, %p102
      %p104 = pneg %p103
      // Predicated region
      $region9: #{tpu_custom_call.1} parent=5 // pred_check
        _
      $region10: #{tpu_custom_call.1} parent=5 // pred_check_branch
        %106 = sbr.rel (%p103) target = $region12
      $region11: #{tpu_custom_call.1} parent=5 // pred_region
        %s107 = ssub.s32 %s15, 1
      $region12: #{tpu_custom_call.1} parent=5 // pred_fallthru
        _
      %p108 = scmp.lt.s32.totalorder %s15, 2
      // Predicated region
      $region13: #{tpu_custom_call.1} parent=5 // pred_check
        %p109 = pneg %p108
      $region14: #{tpu_custom_call.1} parent=5 // pred_check_branch
        %111 = sbr.rel (%p109) target = $region16
      $region15: #{tpu_custom_call.1} parent=5 // pred_region
        // Predicated region
        $region17: #{tpu_custom_call.1} parent=15 // pred_check
          %p112 = pneg %p35
        $region18: #{tpu_custom_call.1} parent=15 // pred_check_branch
          %114 = sbr.rel (%p112) target = $region20
        $region19: #{tpu_custom_call.1} parent=15 // pred_region
          %p115 = scmp.lt.s32.totalorder %s15, 1
          %s116 = scalar_select %p115, %s15, 1
          %s117 = smul.addr %s116, 8
          %s118 = scalar_lea.vmem %s0, %s117
        $region20: #{tpu_custom_call.1} parent=15 // pred_fallthru
          _
      $region16: #{tpu_custom_call.1} parent=5 // pred_fallthru
        _
      %p119 = scmp.le.s32.totalorder 1, %s15
      %p120 = scmp.lt.s32.totalorder %s15, 3
      %p121 = pnand %p119, %p120
      %p122 = pneg %p121
      // Predicated region
      $region21: #{tpu_custom_call.1} parent=5 // pred_check
        _
      $region22: #{tpu_custom_call.1} parent=5 // pred_check_branch
        %124 = sbr.rel (%p121) target = $region24
      $region23: #{tpu_custom_call.1} parent=5 // pred_region
        %s125 = ssub.s32 %s15, 1
        %p126 = scmp.lt.s32.totalorder %s20, 1
        %s127 = scalar_select %p126, %s20, 1
        %s128 = smul.addr %s127, 8
        %s129 = scalar_lea.vmem %s0, %s128
        %p130 = pneg %p41
        %p131 = pneg %p38
        %p132 = pneg %p67
        %p133 = pneg %p64
        %s134 = sand.u32 %s54, 1
        %s135 = scalar_lea.sflag [#allocation3], %s134
        %s136 = sand.u32 %s54, 1
        %s137 = smul.addr %s136, 8
        %s138 = scalar_lea.vmem [#allocation2], %s137
        %p139 = pneg %p93
        %p140 = pneg %p90
        %s141 = sand.u32 %s80, 1
        %s142 = scalar_lea.sflag [#allocation5], %s141
        %s143 = sand.u32 %s80, 1
        %s144 = smul.addr %s143, 8
        %s145 = scalar_lea.vmem [#allocation4], %s144
        %p146 = scmp.lt.s32.totalorder %s20, 1
        %s147 = scalar_select %p146, %s20, 1
        %s148 = smul.addr %s147, 8
        %s149 = scalar_lea.vmem %s0, %s148
        %v150 = vld [vmem:[%s149] sm:$0xff]
        %v151 = vlaneseq
        %v152 = vand.u32 %v151, 127
        %v153 = vcvt.s32.f32 %v152
        %v154 = vmul.f32 %v150, 4.0
        %v155 = vadd.f32 %v150, 1.0
        %v156 = vmul.f32 %v155, %v155
        %v157 = vmul.f32 %v150, %v150
        %159 = vrot.lane.b32.xlu0 %v157, 127
        %v160 = vpop.permute.xlu0 %159
        %v162 = vsub.f32 %v156, %v160
        %v163 = vmul.f32 %v155, 2.0
        %165 = vrot.lane.b32.xlu0 %v150, 127
        %v166 = vpop.permute.xlu0 %165
        %v168 = vmul.f32 %v163, %v166
        %v169 = vmul.f32 %v162, %v162
        %v170 = vmul.f32 %v168, %v168
        %v171 = vadd.f32 %v169, %v170
        %v172 = vrcp.pop %v171
        %v173 = vmul.f32 %v171, %v172
        %v174 = vsub.f32 2.0, %v173
        %v175 = vmul.f32 %v172, %v174
        %v176 = vmul.f32 %v154, %v162
        %178 = vrot.lane.b32.xlu0 %v168, 1
        %v179 = vpop.permute.xlu0 %178
        %v181 = vmul.f32 %v154, %v179
        %183 = vrot.lane.b32.xlu0 %v181, 127
        %v184 = vpop.permute.xlu0 %183
        %v186 = vadd.f32 %v176, %v184
        %v187 = vmul.f32 %v186, %v175
        %189 = vrot.lane.b32.xlu0 %v162, 1
        %v190 = vpop.permute.xlu0 %189
        %v192 = vmul.f32 %v154, %v190
        %v193 = vmul.f32 %v154, %v168
        %195 = vrot.lane.b32.xlu0 %v193, 1
        %v196 = vpop.permute.xlu0 %195
        %v198 = vsub.f32 %v192, %v196
        %200 = vrot.lane.b32.xlu0 %v175, 1
        %v201 = vpop.permute.xlu0 %200
        %v203 = vmul.f32 %v198, %v201
        %v204 = vmul.f32 %v150, 1047.9225
        %206 = vset.pattern.permute.xlu0 2
        %207 = vperm.xlu0 %206, %v204
        %v208 = vpop.permute.xlu0 %207
        %v210 = vmul.f32 %v153, %v208
        %211 = vset.pattern.permute.xlu0 1
        %212 = vperm.xlu0 %211, %v150
        %v213 = vpop.permute.xlu0 %212
        %v215 = vmul.f32 %v213, %v210
        %v216 = vmul.f32 %v215, 1.442695
        %v217 = vpow.pop %v216
        %v218 = vsub.f32 %v150, 1.0
        %220 = vset.pattern.permute.xlu0 0
        %221 = vperm.xlu0 %220, %v218
        %v222 = vpop.permute.xlu0 %221
        %v224 = vmul.f32 %v222, %v210
        %v225 = vmul.f32 %v224, 0.15915494
        %v226 = vround.ne.pseudo %v225
        %v227 = vmul.f32 %v226, 6.2831855
        %v228 = vsub.f32 %v224, %v227
        %v229 = vand.u32 2147483647, %v228
        %vm230 = vcmp.le.f32.partialorder %v229, 0.7853982
        %vm231 = vcmp.lt.s32.totalorder %v228, 0
        %v232 = vand.u32 %v228, 2139095040
        %v233 = vshrl.u32 %v232, 23
        %v234 = vsub.s32 %v233, 127
        %v235 = vand.u32 2147483647, %v228
        %v236 = vand.u32 %v235, 8388607
        %v237 = vor.u32 %v236, 8388608
        %v238 = vsub.s32 0, %v237
        %v239 = vadd.s32 %v234, 1
        %vm240 = vcmp.gt.s32.totalorder %v239, 0
        %v241 = vsel %vm240, %v239, 0
        %v242 = vshrl.u32 %v241, 5
        %v243 = vand.u32 %v241, 31
        %v244 = vsub.s32 32, %v243
        %v245 = vshrl.u32 683565275, %v244
        %v246 = vshll.u32 683565275, %v243
        %v247 = vshrl.u32 2475754826, %v244
        %v248 = vor.u32 %v246, %v247
        %v249 = vshll.u32 2475754826, %v243
        %v250 = vshrl.u32 2131351028, %v244
        %v251 = vor.u32 %v249, %v250
        %v252 = vshll.u32 2131351028, %v243
        %v253 = vshrl.u32 2102212464, %v244
        %v254 = vor.u32 %v252, %v253
        %v255 = vshll.u32 2102212464, %v243
        %v256 = vshrl.u32 920167782, %v244
        %v257 = vor.u32 %v255, %v256
        %v258 = vshll.u32 920167782, %v243
        %v259 = vshrl.u32 1326507024, %v244
        %v260 = vor.u32 %v258, %v259
        %vm261 = vcmp.lt.s32.totalorder %v242, 1
        %vm262 = vcmp.lt.s32.totalorder %v242, 2
        %vm263 = vcmp.lt.s32.totalorder %v242, 3
        %vm264 = vcmp.lt.s32.totalorder %v242, 4
        %v265 = vsel %vm261, %v245, %v248
        %v266 = vsel %vm264, %v254, 2102212464
        %v267 = vsel %vm263, %v251, %v266
        %v268 = vsel %vm262, %v265, %v267
        %v269 = vsel %vm261, %v248, %v251
        %v270 = vsel %vm264, %v257, 920167782
        %v271 = vsel %vm263, %v254, %v270
        %v272 = vsel %vm262, %v269, %v271
        %v273 = vsel %vm261, %v251, %v254
        %v274 = vsel %vm264, %v260, 1326507024
        %v275 = vsel %vm263, %v257, %v274
        %v276 = vsel %vm262, %v273, %v275
        %v277 = vshll.u32 %v237, 8
        %v278 = vand.u32 %v277, 65535
        %v279 = vshrl.u32 %v277, 16
        %v280 = vand.u32 %v276, 65535
        %v281 = vshrl.u32 %v276, 16
        %v282 = vmul.u32 %v278, %v280
        %v283 = vmul.u32 %v278, %v281
        %v284 = vmul.u32 %v279, %v280
        %v285 = vmul.u32 %v279, %v281
        %v286 = vshll.u32 %v283, 16
        %v287 = vshrl.u32 %v283, 16
        %v288 = vshll.u32 %v284, 16
        %v289 = vshrl.u32 %v284, 16
        %vm290 = vc.u32 %v282, %v286
        %v291 = vsel %vm290, 1, 0
        %v292 = vadd.s32 %v282, %v286
        %v293 = vadd.s32 %v285, %v291
        %vm294 = vc.u32 %v292, %v288
        %v295 = vsel %vm294, 1, 0
        %v296 = vadd.s32 %v292, %v288
        %v297 = vadd.s32 %v293, %v295
        %v298 = vadd.s32 %v297, %v287
        %v299 = vadd.s32 %v298, %v289
        %v300 = vand.u32 %v277, 65535
        %v301 = vshrl.u32 %v277, 16
        %v302 = vand.u32 %v272, 65535
        %v303 = vshrl.u32 %v272, 16
        %v304 = vmul.u32 %v300, %v302
        %v305 = vmul.u32 %v300, %v303
        %v306 = vmul.u32 %v301, %v302
        %v307 = vmul.u32 %v301, %v303
        %v308 = vshll.u32 %v305, 16
        %v309 = vshrl.u32 %v305, 16
        %v310 = vshll.u32 %v306, 16
        %v311 = vshrl.u32 %v306, 16
        %vm312 = vc.u32 %v304, %v308
        %v313 = vsel %vm312, 1, 0
        %v314 = vadd.s32 %v304, %v308
        %v315 = vadd.s32 %v307, %v313
        %vm316 = vc.u32 %v314, %v310
        %v317 = vsel %vm316, 1, 0
        %v318 = vadd.s32 %v314, %v310
        %v319 = vadd.s32 %v315, %v317
        %v320 = vadd.s32 %v319, %v309
        %v321 = vadd.s32 %v320, %v311
        %v322 = vmul.u32 %v277, %v268
        %v323 = vadd.s32 %v299, %v318
        %vm324 = vc.u32 %v299, %v318
        %v325 = vadd.s32 %v321, 1
        %v326 = vsel %vm324, %v325, %v321
        %v327 = vadd.s32 %v322, %v326
        %v328 = vadd.s32 %v327, 536870912
        %v329 = vshrl.u32 %v328, 30
        %v330 = vshll.u32 %v329, 30
        %v331 = vsub.s32 %v327, %v330
        %vm332 = vcmp.lt.s32.totalorder %v331, 0
        %v333 = vsub.s32 0, %v331
        %v334 = vsel %vm332, %v333, %v331
        %v335 = vclz %v334
        %v336 = vsub.s32 %v335, 2
        %vm337 = vcmp.gt.s32.totalorder 0, %v336
        %v338 = vsel %vm337, 0, %v336
        %v339 = vsub.s32 32, %v338
        %v340 = vshll.u32 %v331, %v338
        %v341 = vshrl.u32 %v323, %v339
        %v342 = vor.u32 %v340, %v341
        %v343 = vsub.s32 4294967266, %v338
        %v344 = vadd.s32 %v343, 127
        %v345 = vshll.u32 %v344, 23
        %v346 = vor.u32 4788187, %v345
        %v347 = vand.u32 2147483647, %v346
        %v349 = vcvt.s32.f32 %v342
        %v350 = vmul.f32 %v349, %v347
        %v351 = vxor.u32 %v350, 2147483648
        %v352 = vsel %vm231, %v351, %v350
        %v353 = vsub.s32 4, %v329
        %v354 = vsel %vm231, %v353, %v329
        %v355 = vsel %vm230, %v228, %v352
        %v356 = vsel %vm230, 0, %v354
        %v357 = vmul.f32 %v355, %v355
        %v358 = vmul.f32 %v357, -0.001358992
        %v359 = vadd.f32 %v358, 0.041655596
        %v360 = vmul.f32 %v357, %v359
        %v361 = vadd.f32 %v360, -0.4999988
        %v362 = vmul.f32 %v357, %v361
        %v363 = vadd.f32 1.0, %v362
        %v364 = vmul.f32 %v355, %v355
        %v365 = vmul.f32 %v364, -0.00019511016
        %v366 = vadd.f32 %v365, 0.008332121
        %v367 = vmul.f32 %v364, %v366
        %v368 = vadd.f32 %v367, -0.16666654
        %v369 = vmul.f32 %v364, %v368
        %v370 = vadd.f32 %v369, 1.0
        %v371 = vmul.f32 %v370, %v355
        %vm372 = vweird.f32 %v228
        %v373 = vand.u32 %v356, 3
        %vm374 = vcmp.lt.s32.totalorder %v373, 2
        %vm375 = vcmp.eq.s32.totalorder %v373, 0
        %v376 = vxor.u32 %v371, 2147483648
        %v377 = vsel %vm375, %v363, %v376
        %vm378 = vcmp.eq.s32.totalorder %v373, 2
        %v379 = vxor.u32 %v363, 2147483648
        %v380 = vsel %vm378, %v379, %v371
        %v381 = vsel %vm374, %v377, %v380
        %v382 = vsel %vm372, nan, %v381
        %v383 = vmul.f32 %v217, %v382
        %v384 = vsub.f32 0.0, %v217
        %v385 = vand.u32 2147483647, %v228
        %vm386 = vcmp.le.f32.partialorder %v385, 0.7853982
        %vm387 = vcmp.lt.s32.totalorder %v228, 0
        %v388 = vand.u32 %v228, 2139095040
        %v389 = vshrl.u32 %v388, 23
        %v390 = vsub.s32 %v389, 127
        %v391 = vand.u32 2147483647, %v228
        %v392 = vand.u32 %v391, 8388607
        %v393 = vor.u32 %v392, 8388608
        %v394 = vsub.s32 0, %v393
        %v395 = vadd.s32 %v390, 1
        %vm396 = vcmp.gt.s32.totalorder %v395, 0
        %v397 = vsel %vm396, %v395, 0
        %v398 = vshrl.u32 %v397, 5
        %v399 = vand.u32 %v397, 31
        %v400 = vsub.s32 32, %v399
        %v401 = vshrl.u32 683565275, %v400
        %v402 = vshll.u32 683565275, %v399
        %v403 = vshrl.u32 2475754826, %v400
        %v404 = vor.u32 %v402, %v403
        %v405 = vshll.u32 2475754826, %v399
        %v406 = vshrl.u32 2131351028, %v400
        %v407 = vor.u32 %v405, %v406
        %v408 = vshll.u32 2131351028, %v399
        %v409 = vshrl.u32 2102212464, %v400
        %v410 = vor.u32 %v408, %v409
        %v411 = vshll.u32 2102212464, %v399
        %v412 = vshrl.u32 920167782, %v400
        %v413 = vor.u32 %v411, %v412
        %v414 = vshll.u32 920167782, %v399
        %v415 = vshrl.u32 1326507024, %v400
        %v416 = vor.u32 %v414, %v415
        %vm417 = vcmp.lt.s32.totalorder %v398, 1
        %vm418 = vcmp.lt.s32.totalorder %v398, 2
        %vm419 = vcmp.lt.s32.totalorder %v398, 3
        %vm420 = vcmp.lt.s32.totalorder %v398, 4
        %v421 = vsel %vm417, %v401, %v404
        %v422 = vsel %vm420, %v410, 2102212464
        %v423 = vsel %vm419, %v407, %v422
        %v424 = vsel %vm418, %v421, %v423
        %v425 = vsel %vm417, %v404, %v407
        %v426 = vsel %vm420, %v413, 920167782
        %v427 = vsel %vm419, %v410, %v426
        %v428 = vsel %vm418, %v425, %v427
        %v429 = vsel %vm417, %v407, %v410
        %v430 = vsel %vm420, %v416, 1326507024
        %v431 = vsel %vm419, %v413, %v430
        %v432 = vsel %vm418, %v429, %v431
        %v433 = vshll.u32 %v393, 8
        %v434 = vand.u32 %v433, 65535
        %v435 = vshrl.u32 %v433, 16
        %v436 = vand.u32 %v432, 65535
        %v437 = vshrl.u32 %v432, 16
        %v438 = vmul.u32 %v434, %v436
        %v439 = vmul.u32 %v434, %v437
        %v440 = vmul.u32 %v435, %v436
        %v441 = vmul.u32 %v435, %v437
        %v442 = vshll.u32 %v439, 16
        %v443 = vshrl.u32 %v439, 16
        %v444 = vshll.u32 %v440, 16
        %v445 = vshrl.u32 %v440, 16
        %vm446 = vc.u32 %v438, %v442
        %v447 = vsel %vm446, 1, 0
        %v448 = vadd.s32 %v438, %v442
        %v449 = vadd.s32 %v441, %v447
        %vm450 = vc.u32 %v448, %v444
        %v451 = vsel %vm450, 1, 0
        %v452 = vadd.s32 %v448, %v444
        %v453 = vadd.s32 %v449, %v451
        %v454 = vadd.s32 %v453, %v443
        %v455 = vadd.s32 %v454, %v445
        %v456 = vand.u32 %v433, 65535
        %v457 = vshrl.u32 %v433, 16
        %v458 = vand.u32 %v428, 65535
        %v459 = vshrl.u32 %v428, 16
        %v460 = vmul.u32 %v456, %v458
        %v461 = vmul.u32 %v456, %v459
        %v462 = vmul.u32 %v457, %v458
        %v463 = vmul.u32 %v457, %v459
        %v464 = vshll.u32 %v461, 16
        %v465 = vshrl.u32 %v461, 16
        %v466 = vshll.u32 %v462, 16
        %v467 = vshrl.u32 %v462, 16
        %vm468 = vc.u32 %v460, %v464
        %v469 = vsel %vm468, 1, 0
        %v470 = vadd.s32 %v460, %v464
        %v471 = vadd.s32 %v463, %v469
        %vm472 = vc.u32 %v470, %v466
        %v473 = vsel %vm472, 1, 0
        %v474 = vadd.s32 %v470, %v466
        %v475 = vadd.s32 %v471, %v473
        %v476 = vadd.s32 %v475, %v465
        %v477 = vadd.s32 %v476, %v467
        %v478 = vmul.u32 %v433, %v424
        %v479 = vadd.s32 %v455, %v474
        %vm480 = vc.u32 %v455, %v474
        %v481 = vadd.s32 %v477, 1
        %v482 = vsel %vm480, %v481, %v477
        %v483 = vadd.s32 %v478, %v482
        %v484 = vadd.s32 %v483, 536870912
        %v485 = vshrl.u32 %v484, 30
        %v486 = vshll.u32 %v485, 30
        %v487 = vsub.s32 %v483, %v486
        %vm488 = vcmp.lt.s32.totalorder %v487, 0
        %v489 = vsub.s32 0, %v487
        %v490 = vsel %vm488, %v489, %v487
        %v491 = vclz %v490
        %v492 = vsub.s32 %v491, 2
        %vm493 = vcmp.gt.s32.totalorder 0, %v492
        %v494 = vsel %vm493, 0, %v492
        %v495 = vsub.s32 32, %v494
        %v496 = vshll.u32 %v487, %v494
        %v497 = vshrl.u32 %v479, %v495
        %v498 = vor.u32 %v496, %v497
        %v499 = vsub.s32 4294967266, %v494
        %v500 = vadd.s32 %v499, 127
        %v501 = vshll.u32 %v500, 23
        %v502 = vor.u32 4788187, %v501
        %v503 = vand.u32 2147483647, %v502
        %v505 = vcvt.s32.f32 %v498
        %v506 = vmul.f32 %v505, %v503
        %v507 = vxor.u32 %v506, 2147483648
        %v508 = vsel %vm387, %v507, %v506
        %v509 = vsub.s32 4, %v485
        %v510 = vsel %vm387, %v509, %v485
        %v511 = vsel %vm386, %v228, %v508
        %v512 = vsel %vm386, 0, %v510
        %v513 = vmul.f32 %v511, %v511
        %v514 = vmul.f32 %v513, -0.001358992
        %v515 = vadd.f32 %v514, 0.041655596
        %v516 = vmul.f32 %v513, %v515
        %v517 = vadd.f32 %v516, -0.4999988
        %v518 = vmul.f32 %v513, %v517
        %v519 = vadd.f32 1.0, %v518
        %v520 = vmul.f32 %v511, %v511
        %v521 = vmul.f32 %v520, -0.00019511016
        %v522 = vadd.f32 %v521, 0.008332121
        %v523 = vmul.f32 %v520, %v522
        %v524 = vadd.f32 %v523, -0.16666654
        %v525 = vmul.f32 %v520, %v524
        %v526 = vadd.f32 %v525, 1.0
        %v527 = vmul.f32 %v526, %v511
        %vm528 = vweird.f32 %v228
        %v529 = vadd.s32 %v512, 3
        %v530 = vand.u32 %v529, 3
        %vm531 = vcmp.lt.s32.totalorder %v530, 2
        %vm532 = vcmp.eq.s32.totalorder %v530, 0
        %v533 = vxor.u32 %v527, 2147483648
        %v534 = vsel %vm532, %v519, %v533
        %vm535 = vcmp.eq.s32.totalorder %v530, 2
        %v536 = vxor.u32 %v519, 2147483648
        %v537 = vsel %vm535, %v536, %v527
        %v538 = vsel %vm531, %v534, %v537
        %v539 = vsel %vm528, nan, %v538
        %v540 = vmul.f32 %v384, %v539
        %542 = vset.pattern.permute.xlu0 0
        %543 = vperm.xlu0 %542, %v187
        %v544 = vpop.permute.xlu0 %543
        %v546 = vmul.f32 %v544, %v383
        %548 = vset.pattern.permute.xlu0 1
        %549 = vperm.xlu0 %548, %v203
        %v550 = vpop.permute.xlu0 %549
        %v552 = vmul.f32 %v550, %v540
        %v553 = vsub.f32 %v546, %v552
        %v554 = vmul.f32 %v544, %v540
        %v555 = vmul.f32 %v550, %v383
        %v556 = vadd.f32 %v554, %v555
        %v557 = vmul.f32 %v553, %v553
        %v558 = vmul.f32 %v556, %v556
        %v559 = vadd.f32 %v557, %v558
        %v560 = vrsqrt.pop %v559
        %v561 = vmul.f32 %v560, %v559
        %v562 = vmul.f32 %v561, %v560
        %v563 = vmul.f32 0.5, %v562
        %v564 = vsub.f32 1.5, %v563
        %v565 = vmul.f32 %v560, %v564
        %v566 = vmul.f32 %v559, %v565
        %vm567 = vcmp.eq.f32.partialorder %v559, inf
        %v568 = vsel %vm567, %v559, %v566
        %vm569 = vcmp.eq.f32.partialorder %v559, 0.0
        %v570 = vand.u32 %v559, 2147483648
        %v571 = vsel %vm569, %v570, %v568
        %v572 = vand.u32 2147483647, %v553
        %v573 = vand.u32 2147483647, %v556
        %v574 = vmax.f32 %v572, %v573
        %v575 = vmin.f32 %v572, %v573
        %vm576 = vcmp.gt.f32.partialorder %v574, 0.0
        %v577 = vsel %vm576, %v574, 1.0
        %v578 = vrcp.pop %v577
        %v579 = vmul.f32 %v575, %v578
        %v580 = vmul.f32 %v579, %v579
        %v581 = vmul.f32 %v580, %v580
        %v582 = vmul.f32 %v581, %v581
        %v583 = vmul.f32 %v580, 0.19993551
        %v584 = vadd.f32 %v583, -0.33333147
        %v585 = vmul.f32 %v580, 0.10656264
        %v586 = vadd.f32 %v585, -0.142089
        %v587 = vmul.f32 %v580, 0.042909615
        %v588 = vadd.f32 %v587, -0.07528964
        %v589 = vmul.f32 %v580, 0.0028662258
        %v590 = vadd.f32 %v589, -0.016165737
        %v591 = vmul.f32 %v586, %v581
        %v592 = vadd.f32 %v584, %v591
        %v593 = vmul.f32 %v590, %v581
        %v594 = vadd.f32 %v588, %v593
        %v595 = vmul.f32 %v594, %v582
        %v596 = vadd.f32 %v592, %v595
        %v597 = vmul.f32 %v580, %v596
        %v598 = vmul.f32 %v579, %v597
        %v599 = vadd.f32 %v579, %v598
        %vm600 = vcmp.gt.f32.partialorder %v573, %v572
        %v601 = vsub.f32 1.5707964, %v599
        %v602 = vsel %vm600, %v601, %v599
        %vm603 = vcmp.lt.f32.partialorder %v553, 0.0
        %v604 = vsub.f32 3.1415927, %v602
        %v605 = vsel %vm603, %v604, %v602
        %vm606 = vcmp.lt.f32.partialorder %v556, 0.0
        %v607 = vsub.f32 0.0, %v605
        %v608 = vsel %vm606, %v607, %v605
        %vm609 = vcmp.ge.s32.totalorder %v152, 1
        %v610 = vsel %vm609, 1, 0
        %v611 = vcvt.s32.f32 %v610
        %vm612 = vcmp.ge.s32.totalorder %v152, 2
        %v613 = vsel %vm612, 1, 0
        %v614 = vcvt.s32.f32 %v613
        %vm615 = vcmp.ge.s32.totalorder %v152, 4
        %v616 = vsel %vm615, 1, 0
        %v617 = vcvt.s32.f32 %v616
        %vm618 = vcmp.ge.s32.totalorder %v152, 8
        %v619 = vsel %vm618, 1, 0
        %v620 = vcvt.s32.f32 %v619
        %vm621 = vcmp.ge.s32.totalorder %v152, 16
        %v622 = vsel %vm621, 1, 0
        %v623 = vcvt.s32.f32 %v622
        %vm624 = vcmp.ge.s32.totalorder %v152, 32
        %v625 = vsel %vm624, 1, 0
        %v626 = vcvt.s32.f32 %v625
        %vm627 = vcmp.ge.s32.totalorder %v152, 64
        %v628 = vsel %vm627, 1, 0
        %v629 = vcvt.s32.f32 %v628
        %630 = vrot.lane.b32.xlu0 %v608, 1
        %v631 = vpop.permute.xlu0 %630
        %v632 = vsub.f32 %v608, %v631
        %v633 = vmul.f32 %v611, %v632
        %v634 = vadd.f32 %v633, 3.1415927
        %v635 = vrcp.pop 6.2831855
        %v636 = vmul.f32 6.2831855, %v635
        %v637 = vsub.f32 1.0, %v636
        %v638 = vmul.f32 %v635, %v637
        %v639 = vadd.f32 %v635, %v638
        %vm640 = vweird.f32 %v635
        %v641 = vsel %vm640, %v635, %v639
        %v642 = vmul.f32 %v634, %v641
        %v643 = vfloor.f32 %v642
        %v644 = vmul.f32 %v643, 6.2831855
        %v645 = vsub.f32 %v634, %v644
        %v646 = vsub.f32 %v645, 3.1415927
        %vm647 = vcmp.eq.f32.partialorder %v646, -3.1415927
        %vm648 = vcmp.gt.f32.partialorder %v633, 0.0
        %vm649 = vmand %vm647, %vm648
        %v650 = vsel %vm649, 3.1415927, %v646
        %v651 = vsub.f32 %v650, %v633
        %v652 = vand.u32 2147483647, %v633
        %vm653 = vcmp.lt.f32.partialorder %v652, 3.1415927
        %v654 = vsel %vm653, 0.0, %v651
        %655 = vrot.lane.b32.xlu0 %v654, 1
        %v656 = vpop.permute.xlu0 %655
        %v657 = vmul.f32 %v611, %v656
        %v658 = vadd.f32 %v654, %v657
        %659 = vrot.lane.b32.xlu0 %v658, 2
        %v660 = vpop.permute.xlu0 %659
        %v661 = vmul.f32 %v614, %v660
        %v662 = vadd.f32 %v658, %v661
        %663 = vrot.lane.b32.xlu0 %v662, 4
        %v664 = vpop.permute.xlu0 %663
        %v665 = vmul.f32 %v617, %v664
        %v666 = vadd.f32 %v662, %v665
        %667 = vrot.lane.b32.xlu0 %v666, 8
        %v668 = vpop.permute.xlu0 %667
        %v669 = vmul.f32 %v620, %v668
        %v670 = vadd.f32 %v666, %v669
        %671 = vrot.lane.b32.xlu0 %v670, 16
        %v672 = vpop.permute.xlu0 %671
        %v673 = vmul.f32 %v623, %v672
        %v674 = vadd.f32 %v670, %v673
        %675 = vrot.lane.b32.xlu0 %v674, 32
        %v676 = vpop.permute.xlu0 %675
        %v677 = vmul.f32 %v626, %v676
        %v678 = vadd.f32 %v674, %v677
        %679 = vrot.lane.b32.xlu0 %v678, 64
        %v680 = vpop.permute.xlu0 %679
        %v681 = vmul.f32 %v629, %v680
        %v682 = vadd.f32 %v678, %v681
        %683 = vst [vmem:[%s138] sm:$0xff] %v571
        %v684 = vadd.f32 %v608, %v682
        %685 = vst [vmem:[%s145] sm:$0xff] %v684
        %s686 = sand.u32 %s54, 1
        %s687 = scalar_lea.sflag [#allocation3], %s686
        %s688 = sand.u32 %s54, 1
        %s689 = smul.addr %s688, 8
        %s690 = scalar_lea.vmem [#allocation2], %s689
        %s691 = sand.u32 %s80, 1
        %s692 = scalar_lea.sflag [#allocation5], %s691
        %s693 = sand.u32 %s80, 1
        %s694 = smul.addr %s693, 8
        %s695 = scalar_lea.vmem [#allocation4], %s694
        // Predicated region
        $region25: #{tpu_custom_call.1} parent=23 // pred_check
          %p696 = pneg %p64
        $region26: #{tpu_custom_call.1} parent=23 // pred_check_branch
          %698 = sbr.rel (%p696) target = $region28
        $region27: #{tpu_custom_call.1} parent=23 // pred_region
          %700 = vsyncadd %s687, 0
          %s701 = smul.addr %s20, 8
          %s702 = scalar_lea.hbm %s1, %s701
          %s704 = sshll.u32 %s690, 4
          %s705 = int_to_ptr.vmem [resolvable:$true] %s704
          %s706 = sshll.u32 %s702, 4
          %s707 = int_to_ptr.hbm [resolvable:$true] %s706
          %709 = dma.vmem_to_hbm [thread:$0]  %s705, 128, %s707, %s687
        $region28: #{tpu_custom_call.1} parent=23 // pred_fallthru
          _
        // Predicated region
        $region29: #{tpu_custom_call.1} parent=23 // pred_check
          %p710 = pneg %p90
        $region30: #{tpu_custom_call.1} parent=23 // pred_check_branch
          %712 = sbr.rel (%p710) target = $region32
        $region31: #{tpu_custom_call.1} parent=23 // pred_region
          %714 = vsyncadd %s692, 0
          %s715 = smul.addr %s20, 8
          %s716 = scalar_lea.hbm %s2, %s715
          %s718 = sshll.u32 %s695, 4
          %s719 = int_to_ptr.vmem [resolvable:$true] %s718
          %s720 = sshll.u32 %s716, 4
          %s721 = int_to_ptr.hbm [resolvable:$true] %s720
          %723 = dma.vmem_to_hbm [thread:$0]  %s719, 128, %s721, %s692
        $region32: #{tpu_custom_call.1} parent=23 // pred_fallthru
          _
      $region24: #{tpu_custom_call.1} parent=5 // pred_fallthru
        _
      %p724 = scmp.le.s32.totalorder 2, %s15
      // Predicated region
      $region33: #{tpu_custom_call.1} parent=5 // pred_check
        %p725 = pneg %p724
      $region34: #{tpu_custom_call.1} parent=5 // pred_check_branch
        %727 = sbr.rel (%p725) target = $region36
      $region35: #{tpu_custom_call.1} parent=5 // pred_region
        %s728 = ssub.s32 %s15, 2
        // Predicated region
        $region37: #{tpu_custom_call.1} parent=35 // pred_check
          %p729 = pneg %p70
        $region38: #{tpu_custom_call.1} parent=35 // pred_check_branch
          %731 = sbr.rel (%p729) target = $region40
        $region39: #{tpu_custom_call.1} parent=35 // pred_region
          %s732 = sand.u32 %s55, 1
          %s733 = scalar_lea.sflag [#allocation3], %s732
          %s734 = sand.u32 %s55, 1
          %s735 = smul.addr %s734, 8
          %s736 = scalar_lea.vmem [#allocation2], %s735
          %738 = dma.done %s733, 128
        $region40: #{tpu_custom_call.1} parent=35 // pred_fallthru
          _
        // Predicated region
        $region41: #{tpu_custom_call.1} parent=35 // pred_check
          %p739 = pneg %p96
        $region42: #{tpu_custom_call.1} parent=35 // pred_check_branch
          %741 = sbr.rel (%p739) target = $region44
        $region43: #{tpu_custom_call.1} parent=35 // pred_region
          %s742 = sand.u32 %s81, 1
          %s743 = scalar_lea.sflag [#allocation5], %s742
          %s744 = sand.u32 %s81, 1
          %s745 = smul.addr %s744, 8
          %s746 = scalar_lea.vmem [#allocation4], %s745
          %748 = dma.done %s743, 128
        $region44: #{tpu_custom_call.1} parent=35 // pred_fallthru
          _
      $region36: #{tpu_custom_call.1} parent=5 // pred_fallthru
        _
    $region6: #{tpu_custom_call.1} parent=1 // loop_footer
      %s19 = sadd.s32 1, %s15
    $region7: #{tpu_custom_call.1} parent=1 // loop_footer_branch
      %14 = sbr.rel target = $region3
    $region8: #{tpu_custom_call.1} parent=1 // loop_exit
      _
    %749 = vsyncpa [#allocation3], 1
    %s750 = scalar_lea.sflag [#allocation3], 1
    %751 = vsyncpa %s750, 1
    %752 = vsyncpa [#allocation5], 1
    %s753 = scalar_lea.sflag [#allocation5], 1
    %754 = vsyncpa %s753, 1

</llo_original>
